<compile_context>
chip_gen: v5e
topology: v5e:2x2
jax: 0.10.0
libtpu: 0.0.40
codegen_flags: <defaults>
</compile_context>

<pallas_src>
import jax
import jax.numpy as jnp
import numpy as np
from jax import lax
from jax.experimental import pallas as pl
from jax.experimental.pallas import tpu as pltpu


# ------------------------------ fused kernel -------------------------------

def _cnn_fused_kernel(x_ref, w1_ref, b1_ref, w2_ref, b2_ref,
                      w3_ref, b3_ref, w4_ref, b4_ref, o_ref,
                      pad1_ref, c1_ref, pad2_ref):
    f32 = jnp.float32
    _, BB, H, WCIN = x_ref.shape          # (1, BB, 16, W*Cin=64)
    L1 = w1_ref.shape[-1]                 # conv1 out lanes  = W  * C1 = 128
    K2 = w2_ref.shape[1]                  # conv2 in  lanes  = W2 * C1 = 64
    L2 = w2_ref.shape[-1]                 # conv2 out lanes  = W2 * C2 = 128
    K3 = w3_ref.shape[1]                  # fc1 per-row lanes = W4 * C2 = 64
    HID = w3_ref.shape[-1]
    H2 = H // 2
    H4 = H2 // 2

    # ---- conv1 padded input: halo-only zeroing (width pad folded into weights)
    pad1_ref[:, 0:1, :] = jnp.zeros((BB, 1, WCIN), f32)
    pad1_ref[:, H + 1:H + 2, :] = jnp.zeros((BB, 1, WCIN), f32)
    pad1_ref[:, 1:H + 1, :] = x_ref[...].reshape(BB, H, WCIN)

    # ---- conv1 + ReLU: 3 lane-dense row-GEMMs (kw taps folded into w1_ref) ----
    acc1 = jnp.zeros((BB * H, L1), f32)
    for kh in range(3):
        rows = pad1_ref[:, kh:kh + H, :].reshape(BB * H, WCIN)
        acc1 = acc1 + jnp.dot(rows, w1_ref[kh], preferred_element_type=f32)
    a1 = jnp.maximum(acc1 + b1_ref[...], 0.0)                 # (BB*H, 128)

    # ---- maxpool1: width pairs live in opposite 64-lane halves (weight-permuted
    # output order), height pairs via stride-2 sublane reads of a small scratch.
    wmax1 = jnp.maximum(a1[:, :L1 // 2], a1[:, L1 // 2:])     # (BB*H, 64)
    c1_ref[...] = wmax1.reshape(BB, H, L1 // 2)
    p1 = jnp.maximum(c1_ref[:, pl.ds(0, H2, stride=2), :],
                     c1_ref[:, pl.ds(1, H2, stride=2), :])    # (BB, H2, 64)

    # ---- conv2 padded input (halo-only zeroing) ------------------------------
    pad2_ref[:, 0:1, :] = jnp.zeros((BB, 1, K2), f32)
    pad2_ref[:, H2 + 1:H2 + 2, :] = jnp.zeros((BB, 1, K2), f32)
    pad2_ref[:, 1:H2 + 1, :] = p1

    # ---- conv2 + ReLU: 3 lane-dense row-GEMMs --------------------------------
    acc2 = jnp.zeros((BB * H2, L2), f32)
    for kh in range(3):
        rows = pad2_ref[:, kh:kh + H2, :].reshape(BB * H2, K2)
        acc2 = acc2 + jnp.dot(rows, w2_ref[kh], preferred_element_type=f32)
    a2 = jnp.maximum(acc2 + b2_ref[...], 0.0)                 # (BB*H2, 128)

    # ---- maxpool2 + fc1 fused (Flatten order folded into w3), no VMEM round-trip
    wmax2 = jnp.maximum(a2[:, :L2 // 2], a2[:, L2 // 2:]).reshape(BB, H2, K3)
    acc3 = jnp.zeros((BB, HID), f32)
    for i in range(H4):
        pooled = jnp.maximum(wmax2[:, 2 * i, :], wmax2[:, 2 * i + 1, :])
        acc3 = acc3 + jnp.dot(pooled, w3_ref[i], preferred_element_type=f32)
    a3 = jnp.maximum(acc3 + b3_ref[...], 0.0)                 # (BB, HID)

    # ---- fc2 ------------------------------------------------------------------
    out = jnp.dot(a3, w4_ref[...], preferred_element_type=f32) + b4_ref[...]
    o_ref[...] = out.reshape(o_ref.shape).astype(o_ref.dtype)


# ------------------------------ host wrapper --------------------------------

def _split_batch(B):
    """Per-grid-step batch block.  Keep >=2 grid steps when possible (v7x has
    two TensorCores); otherwise fold the whole batch into one step."""
    if B % 2 == 0 and B >= 2:
        BB = B // 2
        while BB > 256 and BB % 2 == 0:     # keep scratch small for huge batches
            BB //= 2
        return BB
    return B


def cnn_forward(x_nchw, kp):
    """Fused CNN forward.  x_nchw: (B, Cin, H, W); kp: folded kernel params."""
    x = jnp.transpose(x_nchw, (0, 2, 3, 1)).astype(jnp.float32)   # NCHW -> NHWC
    B, H, W, Cin = x.shape
    assert H % 4 == 0 and W % 4 == 0
    BB = _split_batch(B)
    G = B // BB
    WCIN = W * Cin
    L1 = kp["w1r"].shape[-1]          # W  * C1
    K2 = kp["w2r"].shape[1]           # W2 * C1
    NCLS = kp["w4"].shape[-1]
    H2 = H // 2

    xg = x.reshape(G, BB, H, WCIN)    # lane = w*Cin + ci (channels minor)

    def const_spec(shape):
        return pl.BlockSpec(shape, lambda g, n=len(shape): (0,) * n)

    in_specs = [
        pl.BlockSpec((1, BB, H, WCIN), lambda g: (g, 0, 0, 0)),
        const_spec(kp["w1r"].shape), const_spec(kp["b1"].shape),
        const_spec(kp["w2r"].shape), const_spec(kp["b2"].shape),
        const_spec(kp["w3r"].shape), const_spec(kp["b3"].shape),
        const_spec(kp["w4"].shape),  const_spec(kp["b4"].shape),
    ]
    out = pl.pallas_call(
        _cnn_fused_kernel,
        out_shape=jax.ShapeDtypeStruct((G, BB, NCLS), jnp.float32),
        grid=(G,),
        in_specs=in_specs,
        out_specs=pl.BlockSpec((1, BB, NCLS), lambda g: (g, 0, 0)),
        scratch_shapes=[
            pltpu.VMEM((BB, H + 2, WCIN), jnp.float32),    # conv1 padded input
            pltpu.VMEM((BB, H, L1 // 2), jnp.float32),     # pool1 width-max
            pltpu.VMEM((BB, H2 + 2, K2), jnp.float32),     # conv2 padded input
        ],
        compiler_params=pltpu.CompilerParams(
            dimension_semantics=("parallel",)),            # v7x: 2 TensorCores
    )(xg, kp["w1r"], kp["b1"], kp["w2r"], kp["b2"],
      kp["w3r"], kp["b3"], kp["w4"], kp["b4"])
    return out.reshape(B, NCLS)


# -------------------- parameters (PyTorch layouts + offline fold) ------------

def init_params(key, cin=4, c1=8, c2=16, hw=16, hidden=32, num_classes=10):
    """Parameters in native PyTorch layouts (OIHW conv weights, (out,in) linears)."""
    k = jax.random.split(key, 8)
    s = 0.1
    hw4 = hw // 4                                    # after two 2x2 maxpools
    return {
        "conv1_w": s * jax.random.normal(k[0], (c1, cin, 3, 3), jnp.float32),
        "conv1_b": s * jax.random.normal(k[1], (c1,), jnp.float32),
        "conv2_w": s * jax.random.normal(k[2], (c2, c1, 3, 3), jnp.float32),
        "conv2_b": s * jax.random.normal(k[3], (c2,), jnp.float32),
        "fc1_w":  s * jax.random.normal(k[4], (hidden, c2 * hw4 * hw4), jnp.float32),
        "fc1_b":  s * jax.random.normal(k[5], (hidden,), jnp.float32),
        "fc2_w":  s * jax.random.normal(k[6], (num_classes, hidden), jnp.float32),
        "fc2_b":  s * jax.random.normal(k[7], (num_classes,), jnp.float32),
    }


def prepare_params(p):
    """One-time offline weight fold (outside the kernel / hot path).

    - Each conv becomes 3 row-GEMM weights (one per kh tap) of shape
      (width*cin, width*cout): the kw taps and the width zero-padding are folded
      in as a block-banded matrix.
    - Output columns use an even/odd-interleaved lane order
        lane(w, co) = (w % 2) * width*cout/2 + (w // 2) * cout + co
      so the 2x2-maxpool width reduction is a 64-lane half-split max in-kernel.
    - fc1's weight absorbs both the torch Flatten (NCHW) ordering and maxpool2's
      spatial layout: w3r[i] multiplies the pooled row i directly.
    """
    w1 = np.asarray(p["conv1_w"])   # (C1, Cin, 3, 3)
    w2 = np.asarray(p["conv2_w"])   # (C2, C1, 3, 3)
    fc1 = np.asarray(p["fc1_w"])    # (HID, C2*H4*W4)
    C1, Cin = w1.shape[0], w1.shape[1]
    C2 = w2.shape[0]
    HID = fc1.shape[0]
    H4 = W4 = int(round((fc1.shape[1] // C2) ** 0.5))
    W2 = 2 * W4
    W = 2 * W2

    def conv_row_weights(wk, cin, cout, width):
        out = np.zeros((3, width * cin, width * cout), np.float32)
        half = width * cout // 2
        for kh in range(3):
            for kw in range(3):
                tap = wk[:, :, kh, kw].T                   # (cin, cout)
                for w_out in range(width):
                    w_in = w_out + kw - 1
                    if 0 <= w_in < width:                  # width pad -> zero rows
                        col0 = (w_out % 2) * half + (w_out // 2) * cout
                        out[kh, w_in * cin:(w_in + 1) * cin,
                            col0:col0 + cout] = tap
        return out

    w1r = conv_row_weights(w1, Cin, C1, W)                 # (3, 64, 128)
    w2r = conv_row_weights(w2, C1, C2, W2)                 # (3, 64, 128)

    fc1r = fc1.reshape(HID, C2, H4, W4)
    w3r = np.zeros((H4, W4 * C2, HID), np.float32)         # (4, 64, 32)
    for i in range(H4):
        for g in range(W4):
            w3r[i, g * C2:(g + 1) * C2, :] = fc1r[:, :, i, g].T

    return {
        "w1r": jnp.asarray(w1r),
        "b1": jnp.asarray(np.tile(np.asarray(p["conv1_b"]), W).reshape(1, W * C1)),
        "w2r": jnp.asarray(w2r),
        "b2": jnp.asarray(np.tile(np.asarray(p["conv2_b"]), W2).reshape(1, W2 * C2)),
        "w3r": jnp.asarray(w3r),
        "b3": jnp.asarray(p["fc1_b"]).reshape(1, -1),
        "w4": jnp.asarray(p["fc2_w"]).T,
        "b4": jnp.asarray(p["fc2_b"]).reshape(1, -1),
    }


# ----------------------- pure-JAX reference (for checking) -------------------

def cnn_reference(x_nchw, p):
    x = x_nchw.astype(jnp.float32)

    def conv(h, w, b):
        y = lax.conv_general_dilated(h, w, (1, 1), ((1, 1), (1, 1)),
                                     dimension_numbers=("NCHW", "OIHW", "NCHW"))
        return y + b.reshape(1, -1, 1, 1)

    def pool(h):
        return lax.reduce_window(h, -jnp.inf, lax.max,
                                 (1, 1, 2, 2), (1, 1, 2, 2), "VALID")

    h = pool(jax.nn.relu(conv(x, p["conv1_w"], p["conv1_b"])))
    h = pool(jax.nn.relu(conv(h, p["conv2_w"], p["conv2_b"])))
    h = h.reshape(h.shape[0], -1)                            # torch Flatten (NCHW)
    h = jax.nn.relu(h @ p["fc1_w"].T + p["fc1_b"])
    return h @ p["fc2_w"].T + p["fc2_b"]


if __name__ == "__main__":
    key = jax.random.PRNGKey(0)
    kx, kparam = jax.random.split(key)
    x = jax.random.normal(kx, (2, 4, 16, 16), jnp.float32)   # NCHW, like PyTorch
    torch_params = init_params(kparam)
    kernel_params = prepare_params(torch_params)             # offline weight fold

    fwd = jax.jit(cnn_forward)
    out = jax.block_until_ready(fwd(x, kernel_params))
    ref = jax.block_until_ready(jax.jit(cnn_reference)(x, torch_params))

    assert out.shape == (2, 10) and out.dtype == jnp.float32
    assert bool(jnp.isfinite(out).all())
    assert bool(jnp.allclose(out, ref, atol=2e-3, rtol=2e-3)), "mismatch vs reference"
    print("KERNEL_OK")
</pallas_src>

<mosaic_0001>
module attributes {stable_mosaic.version = 11 : i64} {
  func.func @_cnn_fused_kernel(%arg0: i32, %arg1: memref<1x1x16x64xf32, #tpu.memory_space<vmem>>, %arg2: memref<3x64x128xf32, #tpu.memory_space<vmem>>, %arg3: memref<1x128xf32, #tpu.memory_space<vmem>>, %arg4: memref<3x64x128xf32, #tpu.memory_space<vmem>>, %arg5: memref<1x128xf32, #tpu.memory_space<vmem>>, %arg6: memref<4x64x32xf32, #tpu.memory_space<vmem>>, %arg7: memref<1x32xf32, #tpu.memory_space<vmem>>, %arg8: memref<32x10xf32, #tpu.memory_space<vmem>>, %arg9: memref<1x10xf32, #tpu.memory_space<vmem>>, %arg10: memref<1x1x10xf32, #tpu.memory_space<vmem>>, %arg11: memref<1x18x64xf32, #tpu.memory_space<vmem>>, %arg12: memref<1x16x64xf32, #tpu.memory_space<vmem>>, %arg13: memref<1x10x64xf32, #tpu.memory_space<vmem>>) attributes {dimension_semantics = [#tpu.dimension_semantics<parallel>], iteration_bounds = array<i64: 2>, scalar_prefetch = 0 : i64, scratch_operands = 3 : i64, tpu.core_type = #tpu.core_type<tc>, window_params = [{transform_indices = @transform_0, window_bounds = array<i64: 1, 1, 16, 64>}, {pipeline_mode = #tpu.pipeline_mode<synchronous>, transform_indices = @transform_1, window_bounds = array<i64: 3, 64, 128>}, {pipeline_mode = #tpu.pipeline_mode<synchronous>, transform_indices = @transform_2, window_bounds = array<i64: 1, 128>}, {pipeline_mode = #tpu.pipeline_mode<synchronous>, transform_indices = @transform_3, window_bounds = array<i64: 3, 64, 128>}, {pipeline_mode = #tpu.pipeline_mode<synchronous>, transform_indices = @transform_4, window_bounds = array<i64: 1, 128>}, {pipeline_mode = #tpu.pipeline_mode<synchronous>, transform_indices = @transform_5, window_bounds = array<i64: 4, 64, 32>}, {pipeline_mode = #tpu.pipeline_mode<synchronous>, transform_indices = @transform_6, window_bounds = array<i64: 1, 32>}, {pipeline_mode = #tpu.pipeline_mode<synchronous>, transform_indices = @transform_7, window_bounds = array<i64: 32, 10>}, {pipeline_mode = #tpu.pipeline_mode<synchronous>, transform_indices = @transform_8, window_bounds = array<i64: 1, 10>}, {transform_indices = @transform_9, window_bounds = array<i64: 1, 1, 10>}]} {
    %cst = arith.constant 0.000000e+00 : f32
    %0 = vector.broadcast %cst : f32 to vector<1x1x64xf32>
    %c0 = arith.constant 0 : index
    %c0_0 = arith.constant 0 : index
    %c0_1 = arith.constant 0 : index
    %1 = vector.load %arg11[%c0, %c0_0, %c0_1] : memref<1x18x64xf32, #tpu.memory_space<vmem>>, vector<1x1x64xf32>
    tpu.vector_store %arg11[%c0, %c0_0, %c0_1], %0 {strides = array<i32>} : memref<1x18x64xf32, #tpu.memory_space<vmem>>, vector<1x1x64xf32>,
    %cst_2 = arith.constant 0.000000e+00 : f32
    %2 = vector.broadcast %cst_2 : f32 to vector<1x1x64xf32>
    %c0_3 = arith.constant 0 : index
    %c17 = arith.constant 17 : index
    %c0_4 = arith.constant 0 : index
    %3 = vector.load %arg11[%c0_3, %c17, %c0_4] : memref<1x18x64xf32, #tpu.memory_space<vmem>>, vector<1x1x64xf32>
    tpu.vector_store %arg11[%c0_3, %c17, %c0_4], %2 {strides = array<i32>} : memref<1x18x64xf32, #tpu.memory_space<vmem>>, vector<1x1x64xf32>,
    %c0_5 = arith.constant 0 : index
    %c0_6 = arith.constant 0 : index
    %c0_7 = arith.constant 0 : index
    %c0_8 = arith.constant 0 : index
    %4 = vector.load %arg1[%c0_5, %c0_6, %c0_7, %c0_8] : memref<1x1x16x64xf32, #tpu.memory_space<vmem>>, vector<1x1x16x64xf32>
    %5 = vector.shape_cast %4 : vector<1x1x16x64xf32> to vector<1x16x64xf32>
    %c0_9 = arith.constant 0 : index
    %c1 = arith.constant 1 : index
    %c0_10 = arith.constant 0 : index
    %6 = vector.load %arg11[%c0_9, %c1, %c0_10] : memref<1x18x64xf32, #tpu.memory_space<vmem>>, vector<1x16x64xf32>
    tpu.vector_store %arg11[%c0_9, %c1, %c0_10], %5 {strides = array<i32>} : memref<1x18x64xf32, #tpu.memory_space<vmem>>, vector<1x16x64xf32>,
    %cst_11 = arith.constant 0.000000e+00 : f32
    %7 = vector.broadcast %cst_11 : f32 to vector<16x128xf32>
    %c0_12 = arith.constant 0 : index
    %c0_13 = arith.constant 0 : index
    %c0_14 = arith.constant 0 : index
    %8 = vector.load %arg11[%c0_12, %c0_13, %c0_14] : memref<1x18x64xf32, #tpu.memory_space<vmem>>, vector<1x16x64xf32>
    %9 = vector.shape_cast %8 : vector<1x16x64xf32> to vector<16x64xf32>
    %c0_15 = arith.constant 0 : index
    %c0_16 = arith.constant 0 : index
    %c0_17 = arith.constant 0 : index
    %10 = vector.load %arg2[%c0_15, %c0_16, %c0_17] : memref<3x64x128xf32, #tpu.memory_space<vmem>>, vector<1x64x128xf32>
    %11 = vector.shape_cast %10 : vector<1x64x128xf32> to vector<64x128xf32>
    %cst_18 = arith.constant dense<0.000000e+00> : vector<16x128xf32>
    %12 = tpu.matmul %9, %11, %cst_18 {dimension_numbers = #tpu.dot_dimension_numbers<[1], [0], [0], [1], [0, 0, 1, 1], [], []>} : vector<16x64xf32>, vector<64x128xf32>, vector<16x128xf32> -> vector<16x128xf32>
    %13 = arith.addf %7, %12 : vector<16x128xf32>
    %c0_19 = arith.constant 0 : index
    %c1_20 = arith.constant 1 : index
    %c0_21 = arith.constant 0 : index
    %14 = vector.load %arg11[%c0_19, %c1_20, %c0_21] : memref<1x18x64xf32, #tpu.memory_space<vmem>>, vector<1x16x64xf32>
    %15 = vector.shape_cast %14 : vector<1x16x64xf32> to vector<16x64xf32>
    %c1_22 = arith.constant 1 : index
    %c0_23 = arith.constant 0 : index
    %c0_24 = arith.constant 0 : index
    %16 = vector.load %arg2[%c1_22, %c0_23, %c0_24] : memref<3x64x128xf32, #tpu.memory_space<vmem>>, vector<1x64x128xf32>
    %17 = vector.shape_cast %16 : vector<1x64x128xf32> to vector<64x128xf32>
    %cst_25 = arith.constant dense<0.000000e+00> : vector<16x128xf32>
    %18 = tpu.matmul %15, %17, %cst_25 {dimension_numbers = #tpu.dot_dimension_numbers<[1], [0], [0], [1], [0, 0, 1, 1], [], []>} : vector<16x64xf32>, vector<64x128xf32>, vector<16x128xf32> -> vector<16x128xf32>
    %19 = arith.addf %13, %18 : vector<16x128xf32>
    %c0_26 = arith.constant 0 : index
    %c2 = arith.constant 2 : index
    %c0_27 = arith.constant 0 : index
    %20 = vector.load %arg11[%c0_26, %c2, %c0_27] : memref<1x18x64xf32, #tpu.memory_space<vmem>>, vector<1x16x64xf32>
    %21 = vector.shape_cast %20 : vector<1x16x64xf32> to vector<16x64xf32>
    %c2_28 = arith.constant 2 : index
    %c0_29 = arith.constant 0 : index
    %c0_30 = arith.constant 0 : index
    %22 = vector.load %arg2[%c2_28, %c0_29, %c0_30] : memref<3x64x128xf32, #tpu.memory_space<vmem>>, vector<1x64x128xf32>
    %23 = vector.shape_cast %22 : vector<1x64x128xf32> to vector<64x128xf32>
    %cst_31 = arith.constant dense<0.000000e+00> : vector<16x128xf32>
    %24 = tpu.matmul %21, %23, %cst_31 {dimension_numbers = #tpu.dot_dimension_numbers<[1], [0], [0], [1], [0, 0, 1, 1], [], []>} : vector<16x64xf32>, vector<64x128xf32>, vector<16x128xf32> -> vector<16x128xf32>
    %25 = arith.addf %19, %24 : vector<16x128xf32>
    %c0_32 = arith.constant 0 : index
    %c0_33 = arith.constant 0 : index
    %26 = vector.load %arg3[%c0_32, %c0_33] : memref<1x128xf32, #tpu.memory_space<vmem>>, vector<1x128xf32>
    %27 = vector.broadcast %26 : vector<1x128xf32> to vector<16x128xf32>
    %28 = arith.addf %25, %27 : vector<16x128xf32>
    %cst_34 = arith.constant 0.000000e+00 : f32
    %29 = vector.broadcast %cst_34 : f32 to vector<16x128xf32>
    %30 = arith.maximumf %28, %29 : vector<16x128xf32>
    %31 = vector.extract_strided_slice %30 {offsets = [0, 0], sizes = [16, 64], strides = [1, 1]} : vector<16x128xf32> to vector<16x64xf32>
    %32 = vector.extract_strided_slice %30 {offsets = [0, 64], sizes = [16, 64], strides = [1, 1]} : vector<16x128xf32> to vector<16x64xf32>
    %33 = arith.maximumf %31, %32 : vector<16x64xf32>
    %34 = vector.shape_cast %33 : vector<16x64xf32> to vector<1x16x64xf32>
    %c0_35 = arith.constant 0 : index
    %c0_36 = arith.constant 0 : index
    %c0_37 = arith.constant 0 : index
    %35 = vector.load %arg12[%c0_35, %c0_36, %c0_37] : memref<1x16x64xf32, #tpu.memory_space<vmem>>, vector<1x16x64xf32>
    tpu.vector_store %arg12[%c0_35, %c0_36, %c0_37], %34 {strides = array<i32>} : memref<1x16x64xf32, #tpu.memory_space<vmem>>, vector<1x16x64xf32>,
    %c0_38 = arith.constant 0 : index
    %c0_39 = arith.constant 0 : index
    %c0_40 = arith.constant 0 : index
    %36 = tpu.strided_load %arg12[%c0_38, %c0_39, %c0_40] {strides = array<i32: 1, 2, 1>} : memref<1x16x64xf32, #tpu.memory_space<vmem>>, vector<1x8x64xf32>
    %c0_41 = arith.constant 0 : index
    %c1_42 = arith.constant 1 : index
    %c0_43 = arith.constant 0 : index
    %37 = tpu.strided_load %arg12[%c0_41, %c1_42, %c0_43] {strides = array<i32: 1, 2, 1>} : memref<1x16x64xf32, #tpu.memory_space<vmem>>, vector<1x8x64xf32>
    %38 = arith.maximumf %36, %37 : vector<1x8x64xf32>
    %cst_44 = arith.constant 0.000000e+00 : f32
    %39 = vector.broadcast %cst_44 : f32 to vector<1x1x64xf32>
    %c0_45 = arith.constant 0 : index
    %c0_46 = arith.constant 0 : index
    %c0_47 = arith.constant 0 : index
    %40 = vector.load %arg13[%c0_45, %c0_46, %c0_47] : memref<1x10x64xf32, #tpu.memory_space<vmem>>, vector<1x1x64xf32>
    tpu.vector_store %arg13[%c0_45, %c0_46, %c0_47], %39 {strides = array<i32>} : memref<1x10x64xf32, #tpu.memory_space<vmem>>, vector<1x1x64xf32>,
    %cst_48 = arith.constant 0.000000e+00 : f32
    %41 = vector.broadcast %cst_48 : f32 to vector<1x1x64xf32>
    %c0_49 = arith.constant 0 : index
    %c9 = arith.constant 9 : index
    %c0_50 = arith.constant 0 : index
    %42 = vector.load %arg13[%c0_49, %c9, %c0_50] : memref<1x10x64xf32, #tpu.memory_space<vmem>>, vector<1x1x64xf32>
    tpu.vector_store %arg13[%c0_49, %c9, %c0_50], %41 {strides = array<i32>} : memref<1x10x64xf32, #tpu.memory_space<vmem>>, vector<1x1x64xf32>,
    %c0_51 = arith.constant 0 : index
    %c1_52 = arith.constant 1 : index
    %c0_53 = arith.constant 0 : index
    %43 = vector.load %arg13[%c0_51, %c1_52, %c0_53] : memref<1x10x64xf32, #tpu.memory_space<vmem>>, vector<1x8x64xf32>
    tpu.vector_store %arg13[%c0_51, %c1_52, %c0_53], %38 {strides = array<i32>} : memref<1x10x64xf32, #tpu.memory_space<vmem>>, vector<1x8x64xf32>,
    %cst_54 = arith.constant 0.000000e+00 : f32
    %44 = vector.broadcast %cst_54 : f32 to vector<8x128xf32>
    %c0_55 = arith.constant 0 : index
    %c0_56 = arith.constant 0 : index
    %c0_57 = arith.constant 0 : index
    %45 = vector.load %arg13[%c0_55, %c0_56, %c0_57] : memref<1x10x64xf32, #tpu.memory_space<vmem>>, vector<1x8x64xf32>
    %46 = vector.shape_cast %45 : vector<1x8x64xf32> to vector<8x64xf32>
    %c0_58 = arith.constant 0 : index
    %c0_59 = arith.constant 0 : index
    %c0_60 = arith.constant 0 : index
    %47 = vector.load %arg4[%c0_58, %c0_59, %c0_60] : memref<3x64x128xf32, #tpu.memory_space<vmem>>, vector<1x64x128xf32>
    %48 = vector.shape_cast %47 : vector<1x64x128xf32> to vector<64x128xf32>
    %cst_61 = arith.constant dense<0.000000e+00> : vector<8x128xf32>
    %49 = tpu.matmul %46, %48, %cst_61 {dimension_numbers = #tpu.dot_dimension_numbers<[1], [0], [0], [1], [0, 0, 1, 1], [], []>} : vector<8x64xf32>, vector<64x128xf32>, vector<8x128xf32> -> vector<8x128xf32>
    %50 = arith.addf %44, %49 : vector<8x128xf32>
    %c0_62 = arith.constant 0 : index
    %c1_63 = arith.constant 1 : index
    %c0_64 = arith.constant 0 : index
    %51 = vector.load %arg13[%c0_62, %c1_63, %c0_64] : memref<1x10x64xf32, #tpu.memory_space<vmem>>, vector<1x8x64xf32>
    %52 = vector.shape_cast %51 : vector<1x8x64xf32> to vector<8x64xf32>
    %c1_65 = arith.constant 1 : index
    %c0_66 = arith.constant 0 : index
    %c0_67 = arith.constant 0 : index
    %53 = vector.load %arg4[%c1_65, %c0_66, %c0_67] : memref<3x64x128xf32, #tpu.memory_space<vmem>>, vector<1x64x128xf32>
    %54 = vector.shape_cast %53 : vector<1x64x128xf32> to vector<64x128xf32>
    %cst_68 = arith.constant dense<0.000000e+00> : vector<8x128xf32>
    %55 = tpu.matmul %52, %54, %cst_68 {dimension_numbers = #tpu.dot_dimension_numbers<[1], [0], [0], [1], [0, 0, 1, 1], [], []>} : vector<8x64xf32>, vector<64x128xf32>, vector<8x128xf32> -> vector<8x128xf32>
    %56 = arith.addf %50, %55 : vector<8x128xf32>
    %c0_69 = arith.constant 0 : index
    %c2_70 = arith.constant 2 : index
    %c0_71 = arith.constant 0 : index
    %57 = vector.load %arg13[%c0_69, %c2_70, %c0_71] : memref<1x10x64xf32, #tpu.memory_space<vmem>>, vector<1x8x64xf32>
    %58 = vector.shape_cast %57 : vector<1x8x64xf32> to vector<8x64xf32>
    %c2_72 = arith.constant 2 : index
    %c0_73 = arith.constant 0 : index
    %c0_74 = arith.constant 0 : index
    %59 = vector.load %arg4[%c2_72, %c0_73, %c0_74] : memref<3x64x128xf32, #tpu.memory_space<vmem>>, vector<1x64x128xf32>
    %60 = vector.shape_cast %59 : vector<1x64x128xf32> to vector<64x128xf32>
    %cst_75 = arith.constant dense<0.000000e+00> : vector<8x128xf32>
    %61 = tpu.matmul %58, %60, %cst_75 {dimension_numbers = #tpu.dot_dimension_numbers<[1], [0], [0], [1], [0, 0, 1, 1], [], []>} : vector<8x64xf32>, vector<64x128xf32>, vector<8x128xf32> -> vector<8x128xf32>
    %62 = arith.addf %56, %61 : vector<8x128xf32>
    %c0_76 = arith.constant 0 : index
    %c0_77 = arith.constant 0 : index
    %63 = vector.load %arg5[%c0_76, %c0_77] : memref<1x128xf32, #tpu.memory_space<vmem>>, vector<1x128xf32>
    %64 = vector.broadcast %63 : vector<1x128xf32> to vector<8x128xf32>
    %65 = arith.addf %62, %64 : vector<8x128xf32>
    %cst_78 = arith.constant 0.000000e+00 : f32
    %66 = vector.broadcast %cst_78 : f32 to vector<8x128xf32>
    %67 = arith.maximumf %65, %66 : vector<8x128xf32>
    %68 = vector.extract_strided_slice %67 {offsets = [0, 0], sizes = [8, 64], strides = [1, 1]} : vector<8x128xf32> to vector<8x64xf32>
    %69 = vector.extract_strided_slice %67 {offsets = [0, 64], sizes = [8, 64], strides = [1, 1]} : vector<8x128xf32> to vector<8x64xf32>
    %70 = arith.maximumf %68, %69 : vector<8x64xf32>
    %71 = vector.shape_cast %70 : vector<8x64xf32> to vector<1x8x64xf32>
    %cst_79 = arith.constant 0.000000e+00 : f32
    %72 = vector.broadcast %cst_79 : f32 to vector<1x32xf32>
    %73 = vector.extract_strided_slice %71 {offsets = [0, 0, 0], sizes = [1, 1, 64], strides = [1, 1, 1]} : vector<1x8x64xf32> to vector<1x1x64xf32>
    %74 = vector.shape_cast %73 : vector<1x1x64xf32> to vector<1x64xf32>
    %75 = vector.extract_strided_slice %71 {offsets = [0, 1, 0], sizes = [1, 1, 64], strides = [1, 1, 1]} : vector<1x8x64xf32> to vector<1x1x64xf32>
    %76 = vector.shape_cast %75 : vector<1x1x64xf32> to vector<1x64xf32>
    %77 = arith.maximumf %74, %76 : vector<1x64xf32>
    %c0_80 = arith.constant 0 : index
    %c0_81 = arith.constant 0 : index
    %c0_82 = arith.constant 0 : index
    %78 = vector.load %arg6[%c0_80, %c0_81, %c0_82] : memref<4x64x32xf32, #tpu.memory_space<vmem>>, vector<1x64x32xf32>
    %79 = vector.shape_cast %78 : vector<1x64x32xf32> to vector<64x32xf32>
    %cst_83 = arith.constant dense<0.000000e+00> : vector<1x32xf32>
    %80 = tpu.matmul %77, %79, %cst_83 {dimension_numbers = #tpu.dot_dimension_numbers<[1], [0], [0], [1], [0, 0, 1, 1], [], []>} : vector<1x64xf32>, vector<64x32xf32>, vector<1x32xf32> -> vector<1x32xf32>
    %81 = arith.addf %72, %80 : vector<1x32xf32>
    %82 = vector.extract_strided_slice %71 {offsets = [0, 2, 0], sizes = [1, 1, 64], strides = [1, 1, 1]} : vector<1x8x64xf32> to vector<1x1x64xf32>
    %83 = vector.shape_cast %82 : vector<1x1x64xf32> to vector<1x64xf32>
    %84 = vector.extract_strided_slice %71 {offsets = [0, 3, 0], sizes = [1, 1, 64], strides = [1, 1, 1]} : vector<1x8x64xf32> to vector<1x1x64xf32>
    %85 = vector.shape_cast %84 : vector<1x1x64xf32> to vector<1x64xf32>
    %86 = arith.maximumf %83, %85 : vector<1x64xf32>
    %c1_84 = arith.constant 1 : index
    %c0_85 = arith.constant 0 : index
    %c0_86 = arith.constant 0 : index
    %87 = vector.load %arg6[%c1_84, %c0_85, %c0_86] : memref<4x64x32xf32, #tpu.memory_space<vmem>>, vector<1x64x32xf32>
    %88 = vector.shape_cast %87 : vector<1x64x32xf32> to vector<64x32xf32>
    %cst_87 = arith.constant dense<0.000000e+00> : vector<1x32xf32>
    %89 = tpu.matmul %86, %88, %cst_87 {dimension_numbers = #tpu.dot_dimension_numbers<[1], [0], [0], [1], [0, 0, 1, 1], [], []>} : vector<1x64xf32>, vector<64x32xf32>, vector<1x32xf32> -> vector<1x32xf32>
    %90 = arith.addf %81, %89 : vector<1x32xf32>
    %91 = vector.extract_strided_slice %71 {offsets = [0, 4, 0], sizes = [1, 1, 64], strides = [1, 1, 1]} : vector<1x8x64xf32> to vector<1x1x64xf32>
    %92 = vector.shape_cast %91 : vector<1x1x64xf32> to vector<1x64xf32>
    %93 = vector.extract_strided_slice %71 {offsets = [0, 5, 0], sizes = [1, 1, 64], strides = [1, 1, 1]} : vector<1x8x64xf32> to vector<1x1x64xf32>
    %94 = vector.shape_cast %93 : vector<1x1x64xf32> to vector<1x64xf32>
    %95 = arith.maximumf %92, %94 : vector<1x64xf32>
    %c2_88 = arith.constant 2 : index
    %c0_89 = arith.constant 0 : index
    %c0_90 = arith.constant 0 : index
    %96 = vector.load %arg6[%c2_88, %c0_89, %c0_90] : memref<4x64x32xf32, #tpu.memory_space<vmem>>, vector<1x64x32xf32>
    %97 = vector.shape_cast %96 : vector<1x64x32xf32> to vector<64x32xf32>
    %cst_91 = arith.constant dense<0.000000e+00> : vector<1x32xf32>
    %98 = tpu.matmul %95, %97, %cst_91 {dimension_numbers = #tpu.dot_dimension_numbers<[1], [0], [0], [1], [0, 0, 1, 1], [], []>} : vector<1x64xf32>, vector<64x32xf32>, vector<1x32xf32> -> vector<1x32xf32>
    %99 = arith.addf %90, %98 : vector<1x32xf32>
    %100 = vector.extract_strided_slice %71 {offsets = [0, 6, 0], sizes = [1, 1, 64], strides = [1, 1, 1]} : vector<1x8x64xf32> to vector<1x1x64xf32>
    %101 = vector.shape_cast %100 : vector<1x1x64xf32> to vector<1x64xf32>
    %102 = vector.extract_strided_slice %71 {offsets = [0, 7, 0], sizes = [1, 1, 64], strides = [1, 1, 1]} : vector<1x8x64xf32> to vector<1x1x64xf32>
    %103 = vector.shape_cast %102 : vector<1x1x64xf32> to vector<1x64xf32>
    %104 = arith.maximumf %101, %103 : vector<1x64xf32>
    %c3 = arith.constant 3 : index
    %c0_92 = arith.constant 0 : index
    %c0_93 = arith.constant 0 : index
    %105 = vector.load %arg6[%c3, %c0_92, %c0_93] : memref<4x64x32xf32, #tpu.memory_space<vmem>>, vector<1x64x32xf32>
    %106 = vector.shape_cast %105 : vector<1x64x32xf32> to vector<64x32xf32>
    %cst_94 = arith.constant dense<0.000000e+00> : vector<1x32xf32>
    %107 = tpu.matmul %104, %106, %cst_94 {dimension_numbers = #tpu.dot_dimension_numbers<[1], [0], [0], [1], [0, 0, 1, 1], [], []>} : vector<1x64xf32>, vector<64x32xf32>, vector<1x32xf32> -> vector<1x32xf32>
    %108 = arith.addf %99, %107 : vector<1x32xf32>
    %c0_95 = arith.constant 0 : index
    %c0_96 = arith.constant 0 : index
    %109 = vector.load %arg7[%c0_95, %c0_96] : memref<1x32xf32, #tpu.memory_space<vmem>>, vector<1x32xf32>
    %110 = arith.addf %108, %109 : vector<1x32xf32>
    %cst_97 = arith.constant 0.000000e+00 : f32
    %111 = vector.broadcast %cst_97 : f32 to vector<1x32xf32>
    %112 = arith.maximumf %110, %111 : vector<1x32xf32>
    %c0_98 = arith.constant 0 : index
    %c0_99 = arith.constant 0 : index
    %113 = vector.load %arg8[%c0_98, %c0_99] : memref<32x10xf32, #tpu.memory_space<vmem>>, vector<32x10xf32>
    %cst_100 = arith.constant dense<0.000000e+00> : vector<1x10xf32>
    %114 = tpu.matmul %112, %113, %cst_100 {dimension_numbers = #tpu.dot_dimension_numbers<[1], [0], [0], [1], [0, 0, 1, 1], [], []>} : vector<1x32xf32>, vector<32x10xf32>, vector<1x10xf32> -> vector<1x10xf32>
    %c0_101 = arith.constant 0 : index
    %c0_102 = arith.constant 0 : index
    %115 = vector.load %arg9[%c0_101, %c0_102] : memref<1x10xf32, #tpu.memory_space<vmem>>, vector<1x10xf32>
    %116 = arith.addf %114, %115 : vector<1x10xf32>
    %117 = vector.shape_cast %116 : vector<1x10xf32> to vector<1x1x10xf32>
    %c0_103 = arith.constant 0 : index
    %c0_104 = arith.constant 0 : index
    %c0_105 = arith.constant 0 : index
    %118 = vector.load %arg10[%c0_103, %c0_104, %c0_105] : memref<1x1x10xf32, #tpu.memory_space<vmem>>, vector<1x1x10xf32>
    tpu.vector_store %arg10[%c0_103, %c0_104, %c0_105], %117 {strides = array<i32>} : memref<1x1x10xf32, #tpu.memory_space<vmem>>, vector<1x1x10xf32>,
    return
  }
  func.func @transform_0(%arg0: i32) -> (i32, i32, i32, i32) {
    %c0_i32 = arith.constant 0 : i32
    %c0_i32_0 = arith.constant 0 : i32
    %c0_i32_1 = arith.constant 0 : i32
    %c0_i32_2 = arith.constant 0 : i32
    return %arg0, %c0_i32, %c0_i32_0, %c0_i32_1 : i32, i32, i32, i32
  }
  func.func @transform_1(%arg0: i32) -> (i32, i32, i32) {
    %c0_i32 = arith.constant 0 : i32
    %c0_i32_0 = arith.constant 0 : i32
    %c0_i32_1 = arith.constant 0 : i32
    %c0_i32_2 = arith.constant 0 : i32
    return %c0_i32, %c0_i32_0, %c0_i32_1 : i32, i32, i32
  }
  func.func @transform_2(%arg0: i32) -> (i32, i32) {
    %c0_i32 = arith.constant 0 : i32
    %c0_i32_0 = arith.constant 0 : i32
    %c0_i32_1 = arith.constant 0 : i32
    return %c0_i32, %c0_i32_0 : i32, i32
  }
  func.func @transform_3(%arg0: i32) -> (i32, i32, i32) {
    %c0_i32 = arith.constant 0 : i32
    %c0_i32_0 = arith.constant 0 : i32
    %c0_i32_1 = arith.constant 0 : i32
    %c0_i32_2 = arith.constant 0 : i32
    return %c0_i32, %c0_i32_0, %c0_i32_1 : i32, i32, i32
  }
  func.func @transform_4(%arg0: i32) -> (i32, i32) {
    %c0_i32 = arith.constant 0 : i32
    %c0_i32_0 = arith.constant 0 : i32
    %c0_i32_1 = arith.constant 0 : i32
    return %c0_i32, %c0_i32_0 : i32, i32
  }
  func.func @transform_5(%arg0: i32) -> (i32, i32, i32) {
    %c0_i32 = arith.constant 0 : i32
    %c0_i32_0 = arith.constant 0 : i32
    %c0_i32_1 = arith.constant 0 : i32
    %c0_i32_2 = arith.constant 0 : i32
    return %c0_i32, %c0_i32_0, %c0_i32_1 : i32, i32, i32
  }
  func.func @transform_6(%arg0: i32) -> (i32, i32) {
    %c0_i32 = arith.constant 0 : i32
    %c0_i32_0 = arith.constant 0 : i32
    %c0_i32_1 = arith.constant 0 : i32
    return %c0_i32, %c0_i32_0 : i32, i32
  }
  func.func @transform_7(%arg0: i32) -> (i32, i32) {
    %c0_i32 = arith.constant 0 : i32
    %c0_i32_0 = arith.constant 0 : i32
    %c0_i32_1 = arith.constant 0 : i32
    return %c0_i32, %c0_i32_0 : i32, i32
  }
  func.func @transform_8(%arg0: i32) -> (i32, i32) {
    %c0_i32 = arith.constant 0 : i32
    %c0_i32_0 = arith.constant 0 : i32
    %c0_i32_1 = arith.constant 0 : i32
    return %c0_i32, %c0_i32_0 : i32, i32
  }
  func.func @transform_9(%arg0: i32) -> (i32, i32, i32) {
    %c0_i32 = arith.constant 0 : i32
    %c0_i32_0 = arith.constant 0 : i32
    %c0_i32_1 = arith.constant 0 : i32
    return %arg0, %c0_i32, %c0_i32_0 : i32, i32, i32
  }
}

</mosaic_0001>

<llo_original>
// kernel: cnn_forward.1
$region0: #{cnn_forward.1}
  #allocation0 [shape = 'u32[]', space=smem, size = 0x4, offset = 0x4, fixed_abs, tag = 'smem constant byte address 0x4 - core index']
  #allocation1 [shape = 'u32[72,128]{1,0:T(1,128)}', space=vmem, size = 0x9000, scoped, tag = 'internal scratch']
  #allocation2 [shape = 'f32[1,18,64]{2,1,0:T(8,128)}', space=vmem, size = 0x3000, scoped, tag = 'scratch operand']
  #allocation3 [shape = 'f32[1,16,64]{2,1,0:T(8,128)}', space=vmem, size = 0x2000, scoped, tag = 'scratch operand']
  #allocation4 [shape = 'f32[1,10,64]{2,1,0:T(8,128)}', space=vmem, size = 0x2000, scoped, tag = 'scratch operand']
  %s0 = inlined_call_operand.vmem [shape: f32[2,1,16,64], index: 0, kind: input, shape index: {}]
  %s1 = inlined_call_operand.vmem [shape: f32[3,64,128], index: 1, kind: input, shape index: {}]
  %s2 = inlined_call_operand.vmem [shape: f32[1,128], index: 2, kind: input, shape index: {}]
  %s3 = inlined_call_operand.vmem [shape: f32[3,64,128], index: 3, kind: input, shape index: {}]
  %s4 = inlined_call_operand.vmem [shape: f32[1,128], index: 4, kind: input, shape index: {}]
  %s5 = inlined_call_operand.vmem [shape: f32[4,64,32], index: 5, kind: input, shape index: {}]
  %s6 = inlined_call_operand.vmem [shape: f32[1,32], index: 6, kind: input, shape index: {}]
  %s7 = inlined_call_operand.vmem [shape: f32[32,10], index: 7, kind: input, shape index: {}]
  %s8 = inlined_call_operand.vmem [shape: f32[1,10], index: 8, kind: input, shape index: {}]
  %s9 = inlined_call_operand.hbm [shape: f32[2,1,10], index: 9, kind: output, shape index: {}]
  %s10 = sld [smem:[#allocation0]]
  $region69: #{cnn_forward.1} parent=0
    _
  %s12 = ssub.s32 1, %s10
  %s13 = scalar_select 0, %s12, %s10
  $region1: #{cnn_forward.1} parent=0
    #allocation5 [shape = 'u8[1024]{0}', space=vmem, size = 0x400, scoped, tag = 'output window, operand 0']
    #allocation6 [shape = 's32[2]{0}', space=sflag, size = 0x8, scoped, tag = 'scoped memory for cnn_forward.1']
    %14 = vsyncpa [#allocation6], 0
    %s15 = scalar_lea.sflag [#allocation6], 1
    %16 = vsyncpa %s15, 0
    loop: start=0, step=1, limit=4
    $region2: #{cnn_forward.1} parent=1 // loop_pre_header
      _
    $region3: #{cnn_forward.1} parent=1 // loop_header
      %s18 = sphi 0, %s22
      %p19 = scmp.ge.s32.totalorder %s18, 4
      %s28 = sphi 0, %s30
      %s31 = sphi 0, %s28
      %s32 = sphi 0, %s31
      %s48 = sphi 0, %s32
      %s52 = sphi 0, %s52
      %s54 = sphi 0, %s52
      %s55 = sphi 0, %s54
      %s69 = sphi 0, %s55
      %s73 = sphi 0, %s73
      %s75 = sphi 0, %s73
      %s76 = sphi 0, %s75
      %s90 = sphi 0, %s76
      %s94 = sphi 0, %s94
      %s96 = sphi 0, %s94
      %s97 = sphi 0, %s96
      %s111 = sphi 0, %s97
      %s115 = sphi 0, %s115
      %s117 = sphi 0, %s115
      %s118 = sphi 0, %s117
      %s132 = sphi 0, %s118
      %s136 = sphi 0, %s136
      %s138 = sphi 0, %s136
      %s139 = sphi 0, %s138
      %s153 = sphi 0, %s139
      %s157 = sphi 0, %s157
      %s159 = sphi 0, %s157
      %s160 = sphi 0, %s159
      %s174 = sphi 0, %s160
      %s178 = sphi 0, %s178
      %s180 = sphi 0, %s178
      %s181 = sphi 0, %s180
      %s195 = sphi 0, %s181
      %s199 = sphi 0, %s199
      %s201 = sphi 0, %s199
      %s202 = sphi 0, %s201
      %s216 = sphi 0, %s202
      %s222 = sphi 0, %s224
      %s225 = sphi 0, %s222
      %s226 = sphi 0, %s225
      %s242 = sphi 0, %s226
    $region4: #{cnn_forward.1} parent=1 // loop_header_branch
      %21 = sbr.rel (%p19) target = $region8
    $region5: #{cnn_forward.1} parent=1 // loop_body
      %s23 = ssub.s32 %s18, 1
      %s24 = ssub.s32 %s18, 2
      %s25 = sadd.s32 %s18, 1
      %s26 = ssub.s32 %s18, %s25
      %p27 = scmp.eq.s32.totalorder %s26, 0
      %s29 = sadd.s32 %s28, 1
      %s30 = scalar_select %p27, %s28, %s29
      %p33 = pneg %p27
      %p34 = scmp.eq.s32.totalorder %s18, 1
      %p35 = por %p33, %p34
      %p36 = scmp.ne.s32.totalorder %s28, %s31
      %p37 = scmp.eq.s32.totalorder %s18, 0
      %p38 = por %p36, %p37
      %p39 = scmp.ne.s32.totalorder %s28, %s31
      %p40 = scmp.eq.s32.totalorder %s23, 1
      %p41 = por %p39, %p40
      %p42 = scmp.ne.s32.totalorder %s31, %s32
      %p43 = scmp.eq.s32.totalorder %s23, 0
      %p44 = por %p42, %p43
      %p45 = scmp.ne.s32.totalorder %s31, %s32
      %p46 = scmp.eq.s32.totalorder %s24, 1
      %p47 = por %p45, %p46
      %p49 = scmp.ne.s32.totalorder %s32, %s48
      %p50 = scmp.eq.s32.totalorder %s24, 0
      %p51 = por %p49, %p50
      %s53 = sadd.s32 %s52, 1
      %p56 = scmp.eq.s32.totalorder %s18, 1
      %p57 = scmp.ne.s32.totalorder %s52, %s54
      %p58 = scmp.eq.s32.totalorder %s18, 0
      %p59 = por %p57, %p58
      %p60 = scmp.ne.s32.totalorder %s52, %s54
      %p61 = scmp.eq.s32.totalorder %s23, 1
      %p62 = por %p60, %p61
      %p63 = scmp.ne.s32.totalorder %s54, %s55
      %p64 = scmp.eq.s32.totalorder %s23, 0
      %p65 = por %p63, %p64
      %p66 = scmp.ne.s32.totalorder %s54, %s55
      %p67 = scmp.eq.s32.totalorder %s24, 1
      %p68 = por %p66, %p67
      %p70 = scmp.ne.s32.totalorder %s55, %s69
      %p71 = scmp.eq.s32.totalorder %s24, 0
      %p72 = por %p70, %p71
      %s74 = sadd.s32 %s73, 1
      %p77 = scmp.eq.s32.totalorder %s18, 1
      %p78 = scmp.ne.s32.totalorder %s73, %s75
      %p79 = scmp.eq.s32.totalorder %s18, 0
      %p80 = por %p78, %p79
      %p81 = scmp.ne.s32.totalorder %s73, %s75
      %p82 = scmp.eq.s32.totalorder %s23, 1
      %p83 = por %p81, %p82
      %p84 = scmp.ne.s32.totalorder %s75, %s76
      %p85 = scmp.eq.s32.totalorder %s23, 0
      %p86 = por %p84, %p85
      %p87 = scmp.ne.s32.totalorder %s75, %s76
      %p88 = scmp.eq.s32.totalorder %s24, 1
      %p89 = por %p87, %p88
      %p91 = scmp.ne.s32.totalorder %s76, %s90
      %p92 = scmp.eq.s32.totalorder %s24, 0
      %p93 = por %p91, %p92
      %s95 = sadd.s32 %s94, 1
      %p98 = scmp.eq.s32.totalorder %s18, 1
      %p99 = scmp.ne.s32.totalorder %s94, %s96
      %p100 = scmp.eq.s32.totalorder %s18, 0
      %p101 = por %p99, %p100
      %p102 = scmp.ne.s32.totalorder %s94, %s96
      %p103 = scmp.eq.s32.totalorder %s23, 1
      %p104 = por %p102, %p103
      %p105 = scmp.ne.s32.totalorder %s96, %s97
      %p106 = scmp.eq.s32.totalorder %s23, 0
      %p107 = por %p105, %p106
      %p108 = scmp.ne.s32.totalorder %s96, %s97
      %p109 = scmp.eq.s32.totalorder %s24, 1
      %p110 = por %p108, %p109
      %p112 = scmp.ne.s32.totalorder %s97, %s111
      %p113 = scmp.eq.s32.totalorder %s24, 0
      %p114 = por %p112, %p113
      %s116 = sadd.s32 %s115, 1
      %p119 = scmp.eq.s32.totalorder %s18, 1
      %p120 = scmp.ne.s32.totalorder %s115, %s117
      %p121 = scmp.eq.s32.totalorder %s18, 0
      %p122 = por %p120, %p121
      %p123 = scmp.ne.s32.totalorder %s115, %s117
      %p124 = scmp.eq.s32.totalorder %s23, 1
      %p125 = por %p123, %p124
      %p126 = scmp.ne.s32.totalorder %s117, %s118
      %p127 = scmp.eq.s32.totalorder %s23, 0
      %p128 = por %p126, %p127
      %p129 = scmp.ne.s32.totalorder %s117, %s118
      %p130 = scmp.eq.s32.totalorder %s24, 1
      %p131 = por %p129, %p130
      %p133 = scmp.ne.s32.totalorder %s118, %s132
      %p134 = scmp.eq.s32.totalorder %s24, 0
      %p135 = por %p133, %p134
      %s137 = sadd.s32 %s136, 1
      %p140 = scmp.eq.s32.totalorder %s18, 1
      %p141 = scmp.ne.s32.totalorder %s136, %s138
      %p142 = scmp.eq.s32.totalorder %s18, 0
      %p143 = por %p141, %p142
      %p144 = scmp.ne.s32.totalorder %s136, %s138
      %p145 = scmp.eq.s32.totalorder %s23, 1
      %p146 = por %p144, %p145
      %p147 = scmp.ne.s32.totalorder %s138, %s139
      %p148 = scmp.eq.s32.totalorder %s23, 0
      %p149 = por %p147, %p148
      %p150 = scmp.ne.s32.totalorder %s138, %s139
      %p151 = scmp.eq.s32.totalorder %s24, 1
      %p152 = por %p150, %p151
      %p154 = scmp.ne.s32.totalorder %s139, %s153
      %p155 = scmp.eq.s32.totalorder %s24, 0
      %p156 = por %p154, %p155
      %s158 = sadd.s32 %s157, 1
      %p161 = scmp.eq.s32.totalorder %s18, 1
      %p162 = scmp.ne.s32.totalorder %s157, %s159
      %p163 = scmp.eq.s32.totalorder %s18, 0
      %p164 = por %p162, %p163
      %p165 = scmp.ne.s32.totalorder %s157, %s159
      %p166 = scmp.eq.s32.totalorder %s23, 1
      %p167 = por %p165, %p166
      %p168 = scmp.ne.s32.totalorder %s159, %s160
      %p169 = scmp.eq.s32.totalorder %s23, 0
      %p170 = por %p168, %p169
      %p171 = scmp.ne.s32.totalorder %s159, %s160
      %p172 = scmp.eq.s32.totalorder %s24, 1
      %p173 = por %p171, %p172
      %p175 = scmp.ne.s32.totalorder %s160, %s174
      %p176 = scmp.eq.s32.totalorder %s24, 0
      %p177 = por %p175, %p176
      %s179 = sadd.s32 %s178, 1
      %p182 = scmp.eq.s32.totalorder %s18, 1
      %p183 = scmp.ne.s32.totalorder %s178, %s180
      %p184 = scmp.eq.s32.totalorder %s18, 0
      %p185 = por %p183, %p184
      %p186 = scmp.ne.s32.totalorder %s178, %s180
      %p187 = scmp.eq.s32.totalorder %s23, 1
      %p188 = por %p186, %p187
      %p189 = scmp.ne.s32.totalorder %s180, %s181
      %p190 = scmp.eq.s32.totalorder %s23, 0
      %p191 = por %p189, %p190
      %p192 = scmp.ne.s32.totalorder %s180, %s181
      %p193 = scmp.eq.s32.totalorder %s24, 1
      %p194 = por %p192, %p193
      %p196 = scmp.ne.s32.totalorder %s181, %s195
      %p197 = scmp.eq.s32.totalorder %s24, 0
      %p198 = por %p196, %p197
      %s200 = sadd.s32 %s199, 1
      %p203 = scmp.eq.s32.totalorder %s18, 1
      %p204 = scmp.ne.s32.totalorder %s199, %s201
      %p205 = scmp.eq.s32.totalorder %s18, 0
      %p206 = por %p204, %p205
      %p207 = scmp.ne.s32.totalorder %s199, %s201
      %p208 = scmp.eq.s32.totalorder %s23, 1
      %p209 = por %p207, %p208
      %p210 = scmp.ne.s32.totalorder %s201, %s202
      %p211 = scmp.eq.s32.totalorder %s23, 0
      %p212 = por %p210, %p211
      %p213 = scmp.ne.s32.totalorder %s201, %s202
      %p214 = scmp.eq.s32.totalorder %s24, 1
      %p215 = por %p213, %p214
      %p217 = scmp.ne.s32.totalorder %s202, %s216
      %p218 = scmp.eq.s32.totalorder %s24, 0
      %p219 = por %p217, %p218
      %s220 = ssub.s32 %s18, %s25
      %p221 = scmp.eq.s32.totalorder %s220, 0
      %s223 = sadd.s32 %s222, 1
      %s224 = scalar_select %p221, %s222, %s223
      %p227 = pneg %p221
      %p228 = scmp.eq.s32.totalorder %s18, 1
      %p229 = por %p227, %p228
      %p230 = scmp.ne.s32.totalorder %s222, %s225
      %p231 = scmp.eq.s32.totalorder %s18, 0
      %p232 = por %p230, %p231
      %p233 = scmp.ne.s32.totalorder %s222, %s225
      %p234 = scmp.eq.s32.totalorder %s23, 1
      %p235 = por %p233, %p234
      %p236 = scmp.ne.s32.totalorder %s225, %s226
      %p237 = scmp.eq.s32.totalorder %s23, 0
      %p238 = por %p236, %p237
      %p239 = scmp.ne.s32.totalorder %s225, %s226
      %p240 = scmp.eq.s32.totalorder %s24, 1
      %p241 = por %p239, %p240
      %p243 = scmp.ne.s32.totalorder %s226, %s242
      %p244 = scmp.eq.s32.totalorder %s24, 0
      %p245 = por %p243, %p244
      %p246 = scmp.le.s32.totalorder 1, %s18
      %p247 = scmp.lt.s32.totalorder %s18, 3
      %p248 = pnand %p246, %p247
      %p249 = pneg %p248
      // Predicated region
      $region9: #{cnn_forward.1} parent=5 // pred_check
        _
      $region10: #{cnn_forward.1} parent=5 // pred_check_branch
        %251 = sbr.rel (%p248) target = $region12
      $region11: #{cnn_forward.1} parent=5 // pred_region
        %s252 = ssub.s32 %s18, 1
        // Predicated region
        $region13: #{cnn_forward.1} parent=11 // pred_check
          %p253 = pneg %p65
        $region14: #{cnn_forward.1} parent=11 // pred_check_branch
          %255 = sbr.rel (%p253) target = $region16
        $region15: #{cnn_forward.1} parent=11 // pred_region
          _
        $region16: #{cnn_forward.1} parent=11 // pred_fallthru
          _
        // Predicated region
        $region17: #{cnn_forward.1} parent=11 // pred_check
          %p256 = pneg %p86
        $region18: #{cnn_forward.1} parent=11 // pred_check_branch
          %258 = sbr.rel (%p256) target = $region20
        $region19: #{cnn_forward.1} parent=11 // pred_region
          _
        $region20: #{cnn_forward.1} parent=11 // pred_fallthru
          _
        // Predicated region
        $region21: #{cnn_forward.1} parent=11 // pred_check
          %p259 = pneg %p107
        $region22: #{cnn_forward.1} parent=11 // pred_check_branch
          %261 = sbr.rel (%p259) target = $region24
        $region23: #{cnn_forward.1} parent=11 // pred_region
          _
        $region24: #{cnn_forward.1} parent=11 // pred_fallthru
          _
        // Predicated region
        $region25: #{cnn_forward.1} parent=11 // pred_check
          %p262 = pneg %p128
        $region26: #{cnn_forward.1} parent=11 // pred_check_branch
          %264 = sbr.rel (%p262) target = $region28
        $region27: #{cnn_forward.1} parent=11 // pred_region
          _
        $region28: #{cnn_forward.1} parent=11 // pred_fallthru
          _
        // Predicated region
        $region29: #{cnn_forward.1} parent=11 // pred_check
          %p265 = pneg %p149
        $region30: #{cnn_forward.1} parent=11 // pred_check_branch
          %267 = sbr.rel (%p265) target = $region32
        $region31: #{cnn_forward.1} parent=11 // pred_region
          _
        $region32: #{cnn_forward.1} parent=11 // pred_fallthru
          _
        // Predicated region
        $region33: #{cnn_forward.1} parent=11 // pred_check
          %p268 = pneg %p170
        $region34: #{cnn_forward.1} parent=11 // pred_check_branch
          %270 = sbr.rel (%p268) target = $region36
        $region35: #{cnn_forward.1} parent=11 // pred_region
          _
        $region36: #{cnn_forward.1} parent=11 // pred_fallthru
          _
        // Predicated region
        $region37: #{cnn_forward.1} parent=11 // pred_check
          %p271 = pneg %p191
        $region38: #{cnn_forward.1} parent=11 // pred_check_branch
          %273 = sbr.rel (%p271) target = $region40
        $region39: #{cnn_forward.1} parent=11 // pred_region
          _
        $region40: #{cnn_forward.1} parent=11 // pred_fallthru
          _
        // Predicated region
        $region41: #{cnn_forward.1} parent=11 // pred_check
          %p274 = pneg %p212
        $region42: #{cnn_forward.1} parent=11 // pred_check_branch
          %276 = sbr.rel (%p274) target = $region44
        $region43: #{cnn_forward.1} parent=11 // pred_region
          _
        $region44: #{cnn_forward.1} parent=11 // pred_fallthru
          _
      $region12: #{cnn_forward.1} parent=5 // pred_fallthru
        _
      %p277 = scmp.lt.s32.totalorder %s18, 2
      // Predicated region
      $region45: #{cnn_forward.1} parent=5 // pred_check
        %p278 = pneg %p277
      $region46: #{cnn_forward.1} parent=5 // pred_check_branch
        %280 = sbr.rel (%p278) target = $region48
      $region47: #{cnn_forward.1} parent=5 // pred_region
        // Predicated region
        $region49: #{cnn_forward.1} parent=47 // pred_check
          %p281 = pneg %p38
        $region50: #{cnn_forward.1} parent=47 // pred_check_branch
          %283 = sbr.rel (%p281) target = $region52
        $region51: #{cnn_forward.1} parent=47 // pred_region
          %p284 = scmp.lt.s32.totalorder %s18, 1
          %s285 = scalar_select %p284, %s18, 1
          %s286 = smul.addr %s285, 2
          %s287 = smul.addr %s286, 8
          %s288 = scalar_lea.vmem %s0, %s287
        $region52: #{cnn_forward.1} parent=47 // pred_fallthru
          _
      $region48: #{cnn_forward.1} parent=5 // pred_fallthru
        _
      %p289 = scmp.le.s32.totalorder 1, %s18
      %p290 = scmp.lt.s32.totalorder %s18, 3
      %p291 = pnand %p289, %p290
      %p292 = pneg %p291
      // Predicated region
      $region53: #{cnn_forward.1} parent=5 // pred_check
        _
      $region54: #{cnn_forward.1} parent=5 // pred_check_branch
        %294 = sbr.rel (%p291) target = $region56
      $region55: #{cnn_forward.1} parent=5 // pred_region
        %s295 = ssub.s32 %s18, 1
        %p296 = scmp.lt.s32.totalorder %s23, 1
        %s297 = scalar_select %p296, %s23, 1
        %s298 = smul.addr %s297, 2
        %s299 = smul.addr %s298, 8
        %s300 = scalar_lea.vmem %s0, %s299
        %p301 = pneg %p44
        %p302 = pneg %p41
        %p303 = pneg %p65
        %p304 = pneg %p62
        %p305 = pneg %p86
        %p306 = pneg %p83
        %p307 = pneg %p107
        %p308 = pneg %p104
        %p309 = pneg %p128
        %p310 = pneg %p125
        %p311 = pneg %p149
        %p312 = pneg %p146
        %p313 = pneg %p170
        %p314 = pneg %p167
        %p315 = pneg %p191
        %p316 = pneg %p188
        %p317 = pneg %p212
        %p318 = pneg %p209
        %p319 = pneg %p238
        %p320 = pneg %p235
        %s321 = sand.u32 %s225, 1
        %s322 = scalar_lea.sflag [#allocation6], %s321
        %s323 = sand.u32 %s225, 1
        %s324 = scalar_lea.vmem [#allocation5], %s323
        %p325 = scmp.lt.s32.totalorder %s23, 1
        %s326 = scalar_select %p325, %s23, 1
        %s327 = smul.addr %s326, 2
        %s328 = smul.addr %s327, 8
        %s329 = scalar_lea.vmem %s0, %s328
        %vm330 = vcmask 516096
        %331 = vst.msk [vmem:[#allocation2] sm:$0x1] %vm330, 0.0
        %332 = vst.msk [vmem:[#allocation2 + $0x11] sm:$0x1] %vm330, 0.0
        %v333 = vld [vmem:[%s329] sm:$0xff]
        %v334 = vld [vmem:[%s329 + $0x8] sm:$0xff]
        %vm335 = vcmask 523264
        %336 = vst.msk [vmem:[#allocation2 + $0x1] sm:$0xff] %vm335, %v333
        %337 = vst.msk [vmem:[#allocation2 + $0x9] sm:$0xff] %vm335, %v334
        %v338 = vld [vmem:[#allocation2] sm:$0xff]
        %v339 = vld [vmem:[#allocation2 + $0x8] sm:$0xff]
        %v340 = vld [vmem:[%s1] sm:$0xff]
        %v341 = vld [vmem:[%s1 + $0x8] sm:$0xff]
        %v342 = vld [vmem:[%s1 + $0x10] sm:$0xff]
        %v343 = vld [vmem:[%s1 + $0x18] sm:$0xff]
        %v344 = vld [vmem:[%s1 + $0x20] sm:$0xff]
        %v345 = vld [vmem:[%s1 + $0x28] sm:$0xff]
        %v346 = vld [vmem:[%s1 + $0x30] sm:$0xff]
        %v347 = vld [vmem:[%s1 + $0x38] sm:$0xff]
        %v348 = vld [vmem:[#allocation2 + $0x1] sm:$0xff]
        %v349 = vld [vmem:[#allocation2 + $0x9] sm:$0xff]
        %s350 = scalar_lea.vmem %s1, 64
        %v351 = vld [vmem:[%s350] sm:$0xff]
        %v352 = vld [vmem:[%s350 + $0x8] sm:$0xff]
        %v353 = vld [vmem:[%s350 + $0x10] sm:$0xff]
        %v354 = vld [vmem:[%s350 + $0x18] sm:$0xff]
        %v355 = vld [vmem:[%s350 + $0x20] sm:$0xff]
        %v356 = vld [vmem:[%s350 + $0x28] sm:$0xff]
        %v357 = vld [vmem:[%s350 + $0x30] sm:$0xff]
        %v358 = vld [vmem:[%s350 + $0x38] sm:$0xff]
        %v360 = vsel %vm335, %v348, 0
        %v363 = vsel %vm335, %v349, 0
        %365 = vmatpush.msra.mxu0 0.0
        %366 = vmatpush.msra.mxu0 0.0
        %367 = vmatpush.msra.mxu0 0.0
        %368 = vmatpush.msra.mxu0 0.0
        %369 = vmatpush.msra.mxu0 0.0
        %370 = vmatpush.msra.mxu0 0.0
        %371 = vmatpush.msra.mxu0 0.0
        %372 = vmatpush.msra.mxu0 0.0
        %373 = vmatpush.msra.mxu0 %v358
        %374 = vmatpush.msra.mxu0 %v357
        %375 = vmatpush.msra.mxu0 %v356
        %376 = vmatpush.msra.mxu0 %v355
        %377 = vmatpush.msra.mxu0 %v354
        %378 = vmatpush.msra.mxu0 %v353
        %379 = vmatpush.msra.mxu0 %v352
        %380 = vmatpush.msra.mxu0 %v351
        %381 = vmatmul.f32.gmra.mxu0 %v360
        %v382 = vpop.f32.mrf.mxu0
        %v383 = vadd.f32 0.0, %v382
        %384 = vmatmul.f32.gmra.mxu0 %v363
        %v385 = vpop.f32.mrf.mxu0
        %v386 = vadd.f32 0.0, %v385
        %387 = vdwg.mxu0
        %v389 = vsel %vm335, %v338, 0
        %v392 = vsel %vm335, %v339, 0
        %394 = vmatpush.msra.mxu0 0.0
        %395 = vmatpush.msra.mxu0 0.0
        %396 = vmatpush.msra.mxu0 0.0
        %397 = vmatpush.msra.mxu0 0.0
        %398 = vmatpush.msra.mxu0 0.0
        %399 = vmatpush.msra.mxu0 0.0
        %400 = vmatpush.msra.mxu0 0.0
        %401 = vmatpush.msra.mxu0 0.0
        %402 = vmatpush.msra.mxu0 %v347
        %403 = vmatpush.msra.mxu0 %v346
        %404 = vmatpush.msra.mxu0 %v345
        %405 = vmatpush.msra.mxu0 %v344
        %406 = vmatpush.msra.mxu0 %v343
        %407 = vmatpush.msra.mxu0 %v342
        %408 = vmatpush.msra.mxu0 %v341
        %409 = vmatpush.msra.mxu0 %v340
        %410 = vmatmul.f32.gmra.mxu0 %v389
        %v411 = vpop.f32.mrf.mxu0
        %v412 = vadd.f32 %v383, %v411
        %413 = vmatmul.f32.gmra.mxu0 %v392
        %v414 = vpop.f32.mrf.mxu0
        %v415 = vadd.f32 %v386, %v414
        %416 = vdwg.mxu0
        %v417 = vld [vmem:[#allocation2 + $0x2] sm:$0xff]
        %v418 = vld [vmem:[#allocation2 + $0xa] sm:$0xff]
        %s419 = scalar_lea.vmem %s1, 128
        %v420 = vld [vmem:[%s419] sm:$0xff]
        %v421 = vld [vmem:[%s419 + $0x8] sm:$0xff]
        %v422 = vld [vmem:[%s419 + $0x10] sm:$0xff]
        %v423 = vld [vmem:[%s419 + $0x18] sm:$0xff]
        %v424 = vld [vmem:[%s419 + $0x20] sm:$0xff]
        %v425 = vld [vmem:[%s419 + $0x28] sm:$0xff]
        %v426 = vld [vmem:[%s419 + $0x30] sm:$0xff]
        %v427 = vld [vmem:[%s419 + $0x38] sm:$0xff]
        %v429 = vsel %vm335, %v417, 0
        %v432 = vsel %vm335, %v418, 0
        %434 = vmatpush.msra.mxu0 0.0
        %435 = vmatpush.msra.mxu0 0.0
        %436 = vmatpush.msra.mxu0 0.0
        %437 = vmatpush.msra.mxu0 0.0
        %438 = vmatpush.msra.mxu0 0.0
        %439 = vmatpush.msra.mxu0 0.0
        %440 = vmatpush.msra.mxu0 0.0
        %441 = vmatpush.msra.mxu0 0.0
        %442 = vmatpush.msra.mxu0 %v427
        %443 = vmatpush.msra.mxu0 %v426
        %444 = vmatpush.msra.mxu0 %v425
        %445 = vmatpush.msra.mxu0 %v424
        %446 = vmatpush.msra.mxu0 %v423
        %447 = vmatpush.msra.mxu0 %v422
        %448 = vmatpush.msra.mxu0 %v421
        %449 = vmatpush.msra.mxu0 %v420
        %450 = vmatmul.f32.gmra.mxu0 %v429
        %v451 = vpop.f32.mrf.mxu0
        %v452 = vadd.f32 0.0, %v451
        %453 = vmatmul.f32.gmra.mxu0 %v432
        %v454 = vpop.f32.mrf.mxu0
        %v455 = vadd.f32 0.0, %v454
        %456 = vdwg.mxu0
        %v457 = vadd.f32 %v412, %v452
        %v458 = vadd.f32 %v415, %v455
        %v459 = vld [vmem:[%s2] sm:$0x1]
        %v461 = vperm.slane %v459, 0
        %v463 = vadd.f32 %v457, %v461
        %v464 = vadd.f32 %v458, %v461
        %v465 = vmax.f32 %v463, 0.0
        %v466 = vmax.f32 %v464, 0.0
        %469 = vrot.lane.b32.xlu0 %v465, 64
        %v470 = vpop.permute.xlu0 %469
        %471 = vrot.lane.b32.xlu0 %v466, 64
        %v472 = vpop.permute.xlu0 %471
        %v475 = vmax.f32 %v465, %v470
        %v476 = vmax.f32 %v466, %v472
        %477 = vst.msk [vmem:[#allocation3] sm:$0xff] %vm335, %v475
        %478 = vst.msk [vmem:[#allocation3 + $0x8] sm:$0xff] %vm335, %v476
        %v479 = vld [vmem:[#allocation3] ss:$2 sm:$0xff]
        %s480 = scalar_lea.vmem [#allocation3], 1
        %v481 = vld [vmem:[%s480] ss:$2 sm:$0xff]
        %v482 = vmax.f32 %v479, %v481
        %483 = vst.msk [vmem:[#allocation4] sm:$0x1] %vm330, 0.0
        %484 = vst.msk [vmem:[#allocation4 + $0x9] sm:$0x1] %vm330, 0.0
        %485 = vst.msk [vmem:[#allocation4 + $0x1] sm:$0xff] %vm335, %v482
        %v486 = vld [vmem:[#allocation4] sm:$0xff]
        %v487 = vld [vmem:[%s3] sm:$0xff]
        %v488 = vld [vmem:[%s3 + $0x8] sm:$0xff]
        %v489 = vld [vmem:[%s3 + $0x10] sm:$0xff]
        %v490 = vld [vmem:[%s3 + $0x18] sm:$0xff]
        %v491 = vld [vmem:[%s3 + $0x20] sm:$0xff]
        %v492 = vld [vmem:[%s3 + $0x28] sm:$0xff]
        %v493 = vld [vmem:[%s3 + $0x30] sm:$0xff]
        %v494 = vld [vmem:[%s3 + $0x38] sm:$0xff]
        %v495 = vld [vmem:[#allocation4 + $0x1] sm:$0xff]
        %s496 = scalar_lea.vmem %s3, 64
        %v497 = vld [vmem:[%s496] sm:$0xff]
        %v498 = vld [vmem:[%s496 + $0x8] sm:$0xff]
        %v499 = vld [vmem:[%s496 + $0x10] sm:$0xff]
        %v500 = vld [vmem:[%s496 + $0x18] sm:$0xff]
        %v501 = vld [vmem:[%s496 + $0x20] sm:$0xff]
        %v502 = vld [vmem:[%s496 + $0x28] sm:$0xff]
        %v503 = vld [vmem:[%s496 + $0x30] sm:$0xff]
        %v504 = vld [vmem:[%s496 + $0x38] sm:$0xff]
        %v506 = vsel %vm335, %v495, 0
        %508 = vmatpush.msra.mxu0 0.0
        %509 = vmatpush.msra.mxu0 0.0
        %510 = vmatpush.msra.mxu0 0.0
        %511 = vmatpush.msra.mxu0 0.0
        %512 = vmatpush.msra.mxu0 0.0
        %513 = vmatpush.msra.mxu0 0.0
        %514 = vmatpush.msra.mxu0 0.0
        %515 = vmatpush.msra.mxu0 0.0
        %516 = vmatpush.msra.mxu0 %v504
        %517 = vmatpush.msra.mxu0 %v503
        %518 = vmatpush.msra.mxu0 %v502
        %519 = vmatpush.msra.mxu0 %v501
        %520 = vmatpush.msra.mxu0 %v500
        %521 = vmatpush.msra.mxu0 %v499
        %522 = vmatpush.msra.mxu0 %v498
        %523 = vmatpush.msra.mxu0 %v497
        %524 = vmatmul.f32.gmra.mxu0 %v506
        %v525 = vpop.f32.mrf.mxu0
        %v526 = vadd.f32 0.0, %v525
        %527 = vdwg.mxu0
        %v529 = vsel %vm335, %v486, 0
        %531 = vmatpush.msra.mxu0 0.0
        %532 = vmatpush.msra.mxu0 0.0
        %533 = vmatpush.msra.mxu0 0.0
        %534 = vmatpush.msra.mxu0 0.0
        %535 = vmatpush.msra.mxu0 0.0
        %536 = vmatpush.msra.mxu0 0.0
        %537 = vmatpush.msra.mxu0 0.0
        %538 = vmatpush.msra.mxu0 0.0
        %539 = vmatpush.msra.mxu0 %v494
        %540 = vmatpush.msra.mxu0 %v493
        %541 = vmatpush.msra.mxu0 %v492
        %542 = vmatpush.msra.mxu0 %v491
        %543 = vmatpush.msra.mxu0 %v490
        %544 = vmatpush.msra.mxu0 %v489
        %545 = vmatpush.msra.mxu0 %v488
        %546 = vmatpush.msra.mxu0 %v487
        %547 = vmatmul.f32.gmra.mxu0 %v529
        %v548 = vpop.f32.mrf.mxu0
        %v549 = vadd.f32 %v526, %v548
        %550 = vdwg.mxu0
        %v551 = vld [vmem:[#allocation4 + $0x2] sm:$0xff]
        %s552 = scalar_lea.vmem %s3, 128
        %v553 = vld [vmem:[%s552] sm:$0xff]
        %v554 = vld [vmem:[%s552 + $0x8] sm:$0xff]
        %v555 = vld [vmem:[%s552 + $0x10] sm:$0xff]
        %v556 = vld [vmem:[%s552 + $0x18] sm:$0xff]
        %v557 = vld [vmem:[%s552 + $0x20] sm:$0xff]
        %v558 = vld [vmem:[%s552 + $0x28] sm:$0xff]
        %v559 = vld [vmem:[%s552 + $0x30] sm:$0xff]
        %v560 = vld [vmem:[%s552 + $0x38] sm:$0xff]
        %v562 = vsel %vm335, %v551, 0
        %564 = vmatpush.msra.mxu0 0.0
        %565 = vmatpush.msra.mxu0 0.0
        %566 = vmatpush.msra.mxu0 0.0
        %567 = vmatpush.msra.mxu0 0.0
        %568 = vmatpush.msra.mxu0 0.0
        %569 = vmatpush.msra.mxu0 0.0
        %570 = vmatpush.msra.mxu0 0.0
        %571 = vmatpush.msra.mxu0 0.0
        %572 = vmatpush.msra.mxu0 %v560
        %573 = vmatpush.msra.mxu0 %v559
        %574 = vmatpush.msra.mxu0 %v558
        %575 = vmatpush.msra.mxu0 %v557
        %576 = vmatpush.msra.mxu0 %v556
        %577 = vmatpush.msra.mxu0 %v555
        %578 = vmatpush.msra.mxu0 %v554
        %579 = vmatpush.msra.mxu0 %v553
        %580 = vmatmul.f32.gmra.mxu0 %v562
        %v581 = vpop.f32.mrf.mxu0
        %v582 = vadd.f32 0.0, %v581
        %583 = vdwg.mxu0
        %v584 = vadd.f32 %v549, %v582
        %v585 = vld [vmem:[%s4] sm:$0x1]
        %v587 = vperm.slane %v585, 0
        %v589 = vadd.f32 %v584, %v587
        %v590 = vmax.f32 %v589, 0.0
        %592 = vrot.lane.b32.xlu0 %v590, 64
        %v593 = vpop.permute.xlu0 %592
        %v595 = vmax.f32 %v590, %v593
        %v597 = vrot.slane %v595, 1
        %v599 = vmax.f32 %v595, %v597
        %v600 = vld [vmem:[%s5] sm:$0xff]
        %v601 = vld [vmem:[%s5 + $0x8] sm:$0xff]
        %v602 = vld [vmem:[%s5 + $0x10] sm:$0xff]
        %v603 = vld [vmem:[%s5 + $0x18] sm:$0xff]
        %v604 = vld [vmem:[%s5 + $0x20] sm:$0xff]
        %v605 = vld [vmem:[%s5 + $0x28] sm:$0xff]
        %v606 = vld [vmem:[%s5 + $0x30] sm:$0xff]
        %v607 = vld [vmem:[%s5 + $0x38] sm:$0xff]
        %s608 = scalar_lea.vmem %s5, 64
        %v609 = vld [vmem:[%s608] sm:$0xff]
        %v610 = vld [vmem:[%s608 + $0x8] sm:$0xff]
        %v611 = vld [vmem:[%s608 + $0x10] sm:$0xff]
        %v612 = vld [vmem:[%s608 + $0x18] sm:$0xff]
        %v613 = vld [vmem:[%s608 + $0x20] sm:$0xff]
        %v614 = vld [vmem:[%s608 + $0x28] sm:$0xff]
        %v615 = vld [vmem:[%s608 + $0x30] sm:$0xff]
        %v616 = vld [vmem:[%s608 + $0x38] sm:$0xff]
        %v618 = vrot.slane %v599, 2
        %v619 = vsel %vm335, %v618, 0
        %621 = vmatpush.msra.mxu0 0.0
        %622 = vmatpush.msra.mxu0 0.0
        %623 = vmatpush.msra.mxu0 0.0
        %624 = vmatpush.msra.mxu0 0.0
        %625 = vmatpush.msra.mxu0 0.0
        %626 = vmatpush.msra.mxu0 0.0
        %627 = vmatpush.msra.mxu0 0.0
        %628 = vmatpush.msra.mxu0 0.0
        %629 = vmatpush.msra.mxu0 %v616
        %630 = vmatpush.msra.mxu0 %v615
        %631 = vmatpush.msra.mxu0 %v614
        %632 = vmatpush.msra.mxu0 %v613
        %633 = vmatpush.msra.mxu0 %v612
        %634 = vmatpush.msra.mxu0 %v611
        %635 = vmatpush.msra.mxu0 %v610
        %636 = vmatpush.msra.mxu0 %v609
        %637 = vmatmul.f32.gmra.mxu0 %v619
        %v638 = vpop.f32.mrf.mxu0
        %v639 = vadd.f32 0.0, %v638
        %640 = vdwg.mxu0
        %v641 = vsel %vm335, %v599, 0
        %643 = vmatpush.msra.mxu0 0.0
        %644 = vmatpush.msra.mxu0 0.0
        %645 = vmatpush.msra.mxu0 0.0
        %646 = vmatpush.msra.mxu0 0.0
        %647 = vmatpush.msra.mxu0 0.0
        %648 = vmatpush.msra.mxu0 0.0
        %649 = vmatpush.msra.mxu0 0.0
        %650 = vmatpush.msra.mxu0 0.0
        %651 = vmatpush.msra.mxu0 %v607
        %652 = vmatpush.msra.mxu0 %v606
        %653 = vmatpush.msra.mxu0 %v605
        %654 = vmatpush.msra.mxu0 %v604
        %655 = vmatpush.msra.mxu0 %v603
        %656 = vmatpush.msra.mxu0 %v602
        %657 = vmatpush.msra.mxu0 %v601
        %658 = vmatpush.msra.mxu0 %v600
        %659 = vmatmul.f32.gmra.mxu0 %v641
        %v660 = vpop.f32.mrf.mxu0
        %v661 = vadd.f32 %v639, %v660
        %662 = vdwg.mxu0
        %s663 = scalar_lea.vmem %s5, 128
        %v664 = vld [vmem:[%s663] sm:$0xff]
        %v665 = vld [vmem:[%s663 + $0x8] sm:$0xff]
        %v666 = vld [vmem:[%s663 + $0x10] sm:$0xff]
        %v667 = vld [vmem:[%s663 + $0x18] sm:$0xff]
        %v668 = vld [vmem:[%s663 + $0x20] sm:$0xff]
        %v669 = vld [vmem:[%s663 + $0x28] sm:$0xff]
        %v670 = vld [vmem:[%s663 + $0x30] sm:$0xff]
        %v671 = vld [vmem:[%s663 + $0x38] sm:$0xff]
        %v672 = vrot.slane %v599, 4
        %v673 = vsel %vm335, %v672, 0
        %675 = vmatpush.msra.mxu0 0.0
        %676 = vmatpush.msra.mxu0 0.0
        %677 = vmatpush.msra.mxu0 0.0
        %678 = vmatpush.msra.mxu0 0.0
        %679 = vmatpush.msra.mxu0 0.0
        %680 = vmatpush.msra.mxu0 0.0
        %681 = vmatpush.msra.mxu0 0.0
        %682 = vmatpush.msra.mxu0 0.0
        %683 = vmatpush.msra.mxu0 %v671
        %684 = vmatpush.msra.mxu0 %v670
        %685 = vmatpush.msra.mxu0 %v669
        %686 = vmatpush.msra.mxu0 %v668
        %687 = vmatpush.msra.mxu0 %v667
        %688 = vmatpush.msra.mxu0 %v666
        %689 = vmatpush.msra.mxu0 %v665
        %690 = vmatpush.msra.mxu0 %v664
        %691 = vmatmul.f32.gmra.mxu0 %v673
        %v692 = vpop.f32.mrf.mxu0
        %v693 = vadd.f32 0.0, %v692
        %694 = vdwg.mxu0
        %v695 = vadd.f32 %v661, %v693
        %s696 = scalar_lea.vmem %s5, 192
        %v697 = vld [vmem:[%s696] sm:$0xff]
        %v698 = vld [vmem:[%s696 + $0x8] sm:$0xff]
        %v699 = vld [vmem:[%s696 + $0x10] sm:$0xff]
        %v700 = vld [vmem:[%s696 + $0x18] sm:$0xff]
        %v701 = vld [vmem:[%s696 + $0x20] sm:$0xff]
        %v702 = vld [vmem:[%s696 + $0x28] sm:$0xff]
        %v703 = vld [vmem:[%s696 + $0x30] sm:$0xff]
        %v704 = vld [vmem:[%s696 + $0x38] sm:$0xff]
        %v705 = vrot.slane %v599, 6
        %v706 = vsel %vm335, %v705, 0
        %708 = vmatpush.msra.mxu0 0.0
        %709 = vmatpush.msra.mxu0 0.0
        %710 = vmatpush.msra.mxu0 0.0
        %711 = vmatpush.msra.mxu0 0.0
        %712 = vmatpush.msra.mxu0 0.0
        %713 = vmatpush.msra.mxu0 0.0
        %714 = vmatpush.msra.mxu0 0.0
        %715 = vmatpush.msra.mxu0 0.0
        %716 = vmatpush.msra.mxu0 %v704
        %717 = vmatpush.msra.mxu0 %v703
        %718 = vmatpush.msra.mxu0 %v702
        %719 = vmatpush.msra.mxu0 %v701
        %720 = vmatpush.msra.mxu0 %v700
        %721 = vmatpush.msra.mxu0 %v699
        %722 = vmatpush.msra.mxu0 %v698
        %723 = vmatpush.msra.mxu0 %v697
        %724 = vmatmul.f32.gmra.mxu0 %v706
        %v725 = vpop.f32.mrf.mxu0
        %v726 = vadd.f32 0.0, %v725
        %727 = vdwg.mxu0
        %v728 = vadd.f32 %v695, %v726
        %v729 = vld [vmem:[%s6] sm:$0x1]
        %v730 = vadd.f32 %v728, %v729
        %v731 = vmax.f32 %v730, 0.0
        %v732 = vld [vmem:[%s7] sm:$0xff]
        %v733 = vld [vmem:[%s7 + $0x8] sm:$0xff]
        %v734 = vld [vmem:[%s7 + $0x10] sm:$0xff]
        %v735 = vld [vmem:[%s7 + $0x18] sm:$0xff]
        %v736 = vld [vmem:[%s8] sm:$0x1]
        %vm737 = vcmask 261120
        %v739 = vsel %vm737, %v731, 0
        %741 = vmatpush.msra.mxu0 0.0
        %742 = vmatpush.msra.mxu0 0.0
        %743 = vmatpush.msra.mxu0 0.0
        %744 = vmatpush.msra.mxu0 0.0
        %745 = vmatpush.msra.mxu0 0.0
        %746 = vmatpush.msra.mxu0 0.0
        %747 = vmatpush.msra.mxu0 0.0
        %748 = vmatpush.msra.mxu0 0.0
        %749 = vmatpush.msra.mxu0 0.0
        %750 = vmatpush.msra.mxu0 0.0
        %751 = vmatpush.msra.mxu0 0.0
        %752 = vmatpush.msra.mxu0 0.0
        %753 = vmatpush.msra.mxu0 %v735
        %754 = vmatpush.msra.mxu0 %v734
        %755 = vmatpush.msra.mxu0 %v733
        %756 = vmatpush.msra.mxu0 %v732
        %757 = vmatmul.f32.gmra.mxu0 %v739
        %v758 = vpop.f32.mrf.mxu0
        %v759 = vadd.f32 %v736, %v758
        %760 = vdwg.mxu0
        %vm761 = vcmask 73728
        %762 = vst.msk [vmem:[%s324] sm:$0x1] %vm761, %v759
        %s763 = sand.u32 %s225, 1
        %s764 = scalar_lea.sflag [#allocation6], %s763
        %s765 = sand.u32 %s225, 1
        %s766 = scalar_lea.vmem [#allocation5], %s765
        // Predicated region
        $region57: #{cnn_forward.1} parent=55 // pred_check
          %p767 = pneg %p235
        $region58: #{cnn_forward.1} parent=55 // pred_check_branch
          %769 = sbr.rel (%p767) target = $region60
        $region59: #{cnn_forward.1} parent=55 // pred_region
          %771 = vsyncadd %s764, 0
          %s772 = scalar_lea.hbm %s9, %s23
          %s774 = sshll.u32 %s766, 4
          %s775 = int_to_ptr.vmem [resolvable:$true] %s774
          %s776 = sshll.u32 %s772, 4
          %s777 = int_to_ptr.hbm [resolvable:$true] %s776
          %779 = dma.vmem_to_hbm [thread:$0]  %s775, 16, %s777, %s764
        $region60: #{cnn_forward.1} parent=55 // pred_fallthru
          _
      $region56: #{cnn_forward.1} parent=5 // pred_fallthru
        _
      %p780 = scmp.le.s32.totalorder 2, %s18
      // Predicated region
      $region61: #{cnn_forward.1} parent=5 // pred_check
        %p781 = pneg %p780
      $region62: #{cnn_forward.1} parent=5 // pred_check_branch
        %783 = sbr.rel (%p781) target = $region64
      $region63: #{cnn_forward.1} parent=5 // pred_region
        %s784 = ssub.s32 %s18, 2
        // Predicated region
        $region65: #{cnn_forward.1} parent=63 // pred_check
          %p785 = pneg %p241
        $region66: #{cnn_forward.1} parent=63 // pred_check_branch
          %787 = sbr.rel (%p785) target = $region68
        $region67: #{cnn_forward.1} parent=63 // pred_region
          %s788 = sand.u32 %s226, 1
          %s789 = scalar_lea.sflag [#allocation6], %s788
          %s790 = sand.u32 %s226, 1
          %s791 = scalar_lea.vmem [#allocation5], %s790
          %793 = dma.done %s789, 16
        $region68: #{cnn_forward.1} parent=63 // pred_fallthru
          _
      $region64: #{cnn_forward.1} parent=5 // pred_fallthru
        _
    $region6: #{cnn_forward.1} parent=1 // loop_footer
      %s22 = sadd.s32 1, %s18
    $region7: #{cnn_forward.1} parent=1 // loop_footer_branch
      %17 = sbr.rel target = $region3
    $region8: #{cnn_forward.1} parent=1 // loop_exit
      _
    %794 = vsyncpa [#allocation6], 1
    %s795 = scalar_lea.sflag [#allocation6], 1
    %796 = vsyncpa %s795, 1

</llo_original>
